<compile_context>
chip_gen: v6e
topology: v6e:2x2x1
jax: 0.10.0
libtpu: 0.0.40
codegen_flags: <defaults>
</compile_context>

<pallas_src>
import jax
import jax.numpy as jnp
from jax.experimental import pallas as pl
from jax.experimental.pallas import tpu as pltpu


LANES = 128
SUBLANES = 8
BLOCK_ROWS = 2048          # 2048 * 128 * 4 B = 1 MiB per block


def _soft_thr_kernel(lam_ref, gamma_ref, x_ref, o_ref):
    # lam_ref / gamma_ref: SMEM scalars of shape (1,)
    t = gamma_ref[0] * lam_ref[0]            # soft_thr = gamma_step * lammda  (t >= 0)
    x = x_ref[...]
    # sign(x) * relu(|x| - t)  ==  (x > t) ? x - t : (x < -t) ? x + t : 0   for t >= 0
    o_ref[...] = jnp.where(x > t, x - t, jnp.where(x < -t, x + t, jnp.float32(0.0)))


def _soft_thr_2d(x2d, lammda, gamma_step):
    """x2d: float32 (M, 128) with M % 8 == 0."""
    M, N = x2d.shape
    assert N == LANES and M % SUBLANES == 0
    tile_m = min(BLOCK_ROWS, M)              # multiple of 8 (M % 8 == 0, BLOCK_ROWS % 8 == 0)
    grid = (pl.cdiv(M, tile_m),)

    return pl.pallas_call(
        _soft_thr_kernel,
        out_shape=jax.ShapeDtypeStruct((M, N), jnp.float32),
        grid_spec=pltpu.PrefetchScalarGridSpec(
            num_scalar_prefetch=0,
            grid=grid,
            in_specs=[
                pl.BlockSpec(memory_space=pltpu.MemorySpace.SMEM),   # lammda  (1,)
                pl.BlockSpec(memory_space=pltpu.MemorySpace.SMEM),   # gamma   (1,)
                pl.BlockSpec((tile_m, N), lambda i: (i, 0)),          # x block (contiguous in HBM)
            ],
            out_specs=pl.BlockSpec((tile_m, N), lambda i: (i, 0)),
        ),
        compiler_params=pltpu.CompilerParams(
            dimension_semantics=("parallel",),
        ),
    )(lammda, gamma_step, x2d)


def soft_thr_layer(sparse_complex, gamma_step, lammda):
    """Forward pass of SoftThr_layer.

    sparse_complex: complex64 array (any shape, e.g. NCHW)
    gamma_step:     scalar (python float or 0-d array)
    lammda:         float32 array of shape (1,) (the nn.Parameter)
    """
    # torch_complex2double: complex -> real with trailing axis (real, imag)
    # (lax.bitcast_convert_type rejects complex dtypes, so stack real/imag;
    #  under jit this fuses with the reshape/pad into a single pass.)
    x_real = jnp.stack(
        [jnp.real(sparse_complex), jnp.imag(sparse_complex)], axis=-1
    ).astype(jnp.float32)
    real_shape = x_real.shape

    flat = x_real.reshape(-1)
    total = flat.shape[0]
    base = SUBLANES * LANES
    padded = ((total + base - 1) // base) * base
    if padded != total:                       # pad only when strictly needed
        flat = jnp.pad(flat, (0, padded - total))
    M = padded // LANES
    x2d = flat.reshape(M, LANES)

    lam = jnp.asarray(lammda, dtype=jnp.float32).reshape((1,))
    gam = jnp.asarray(gamma_step, dtype=jnp.float32).reshape((1,))

    out2d = _soft_thr_2d(x2d, lam, gam)

    out_flat = out2d.reshape(-1)
    if padded != total:
        out_flat = out_flat[:total]
    out_real = out_flat.reshape(real_shape)
    # torch_double2complex: real (..., 2) -> complex
    return (out_real[..., 0] + 1j * out_real[..., 1]).astype(jnp.complex64)


if __name__ == "__main__":
    key = jax.random.PRNGKey(0)
    k_re, k_im = jax.random.split(key)

    B, C, H, W = 2, 4, 16, 16  # NCHW, complex-valued sparse coefficients
    sparse = (
        jax.random.normal(k_re, (B, C, H, W), dtype=jnp.float32)
        + 1j * jax.random.normal(k_im, (B, C, H, W), dtype=jnp.float32)
    ).astype(jnp.complex64)

    # Deterministic parameter init (lammda_Init) and step size.
    lammda = jnp.array([0.05], dtype=jnp.float32)   # nn.Parameter(torch.Tensor(lammda_Init))
    gamma_step = jnp.float32(0.5)

    fwd = jax.jit(soft_thr_layer)
    out = fwd(sparse, gamma_step, lammda)
    jax.block_until_ready(out)

    # Pure-JAX reference (elementwise soft-threshold on real/imag parts).
    thr = gamma_step * lammda[0]
    xr = jnp.stack([sparse.real, sparse.imag], axis=-1)
    ref_r = jnp.sign(xr) * jnp.maximum(jnp.abs(xr) - thr, 0.0)
    ref = (ref_r[..., 0] + 1j * ref_r[..., 1]).astype(jnp.complex64)
    assert jnp.allclose(out, ref, atol=1e-6), "mismatch vs reference"

    print("KERNEL_OK")
</pallas_src>

<mosaic_0001>
module attributes {stable_mosaic.version = 11 : i64} {
  func.func @_soft_thr_kernel(%arg0: i32, %arg1: memref<1xf32, #tpu.memory_space<smem>>, %arg2: memref<1xf32, #tpu.memory_space<smem>>, %arg3: memref<32x128xf32, #tpu.memory_space<vmem>>, %arg4: memref<32x128xf32, #tpu.memory_space<vmem>>) attributes {dimension_semantics = [#tpu.dimension_semantics<parallel>], iteration_bounds = array<i64: 1>, scalar_prefetch = 0 : i64, scratch_operands = 0 : i64, tpu.core_type = #tpu.core_type<tc>, window_params = [{transform_indices = @transform_0, window_bounds = array<i64: 1>}, {transform_indices = @transform_1, window_bounds = array<i64: 1>}, {transform_indices = @transform_2, window_bounds = array<i64: 32, 128>}, {transform_indices = @transform_3, window_bounds = array<i64: 32, 128>}]} {
    %c0 = arith.constant 0 : index
    %0 = memref.load %arg2[%c0] : memref<1xf32, #tpu.memory_space<smem>>
    %c0_0 = arith.constant 0 : index
    %1 = memref.load %arg1[%c0_0] : memref<1xf32, #tpu.memory_space<smem>>
    %2 = arith.mulf %0, %1 : f32
    %c0_1 = arith.constant 0 : index
    %c0_2 = arith.constant 0 : index
    %3 = vector.load %arg3[%c0_1, %c0_2] : memref<32x128xf32, #tpu.memory_space<vmem>>, vector<32x128xf32>
    %4 = vector.broadcast %2 : f32 to vector<32x128xf32>
    %5 = arith.cmpf ogt, %3, %4 : vector<32x128xf32>
    %6 = vector.broadcast %2 : f32 to vector<32x128xf32>
    %7 = arith.subf %3, %6 : vector<32x128xf32>
    %cst = arith.constant 0.000000e+00 : f32
    %8 = arith.subf %cst, %2 : f32
    %9 = vector.broadcast %8 : f32 to vector<32x128xf32>
    %10 = arith.cmpf olt, %3, %9 : vector<32x128xf32>
    %11 = vector.broadcast %2 : f32 to vector<32x128xf32>
    %12 = arith.addf %3, %11 : vector<32x128xf32>
    %cst_3 = arith.constant 0.000000e+00 : f32
    %13 = vector.broadcast %cst_3 : f32 to vector<32x128xf32>
    %14 = arith.select %10, %12, %13 : vector<32x128xi1>, vector<32x128xf32>
    %15 = arith.select %5, %7, %14 : vector<32x128xi1>, vector<32x128xf32>
    %c0_4 = arith.constant 0 : index
    %c0_5 = arith.constant 0 : index
    %16 = vector.load %arg4[%c0_4, %c0_5] : memref<32x128xf32, #tpu.memory_space<vmem>>, vector<32x128xf32>
    tpu.vector_store %arg4[%c0_4, %c0_5], %15 {strides = array<i32>} : memref<32x128xf32, #tpu.memory_space<vmem>>, vector<32x128xf32>,
    return
  }
  func.func @transform_0(%arg0: i32) -> i32 {
    %c0_i32 = arith.constant 0 : i32
    %c0_i32_0 = arith.constant 0 : i32
    return %c0_i32 : i32
  }
  func.func @transform_1(%arg0: i32) -> i32 {
    %c0_i32 = arith.constant 0 : i32
    %c0_i32_0 = arith.constant 0 : i32
    return %c0_i32 : i32
  }
  func.func @transform_2(%arg0: i32) -> (i32, i32) {
    %c0_i32 = arith.constant 0 : i32
    %c0_i32_0 = arith.constant 0 : i32
    return %arg0, %c0_i32 : i32, i32
  }
  func.func @transform_3(%arg0: i32) -> (i32, i32) {
    %c0_i32 = arith.constant 0 : i32
    %c0_i32_0 = arith.constant 0 : i32
    return %arg0, %c0_i32 : i32, i32
  }
}

</mosaic_0001>

<llo_original>
// kernel: custom-call
$region0: #{custom-call}
  %s0 = inlined_call_operand.hbm [shape: c64[2,4,16,16], index: 0, kind: input, shape index: {}]
  %s1 = inlined_call_operand.vmem [shape: f32[2,4,16,16], index: 1, kind: output, shape index: {}]
  $region1: #{custom-call} parent=0
    #allocation0 [shape = 's32[1]{0}', space=sflag, size = 0x4, scoped, tag = 'scoped memory for custom-call']
    %2 = vsyncpa [#allocation0], 0
    %s3 = sshll.u32 %s1, 4
    %s4 = int_to_ptr.vmem [resolvable:$true] %s3
    %6 = dma.hbm_to_vmem [thread:$0]  %s0, 2048, %s4, [#allocation0]
    %7 = dma.done [#allocation0], 2048
    %8 = vsyncpa [#allocation0], 1

// kernel: custom-call.1
$region0: #{custom-call.1}
  %s0 = inlined_call_operand.hbm [shape: c64[2,4,16,16], index: 0, kind: input, shape index: {}]
  %s1 = inlined_call_operand.vmem [shape: f32[2,4,16,16], index: 1, kind: output, shape index: {}]
  %s2 = scalar_lea.hbm %s0, 2048
  $region1: #{custom-call.1} parent=0
    #allocation0 [shape = 's32[1]{0}', space=sflag, size = 0x4, scoped, tag = 'scoped memory for custom-call.1']
    %3 = vsyncpa [#allocation0], 0
    %s4 = sshll.u32 %s1, 4
    %s5 = int_to_ptr.vmem [resolvable:$true] %s4
    %7 = dma.hbm_to_vmem [thread:$0]  %s2, 2048, %s5, [#allocation0]
    %8 = dma.done [#allocation0], 2048
    %9 = vsyncpa [#allocation0], 1

// kernel: soft_thr_layer.1
$region0: #{soft_thr_layer.1}
  #allocation0 [shape = 'u32[]', space=smem, size = 0x4, offset = 0x4, fixed_abs, tag = 'smem constant byte address 0x4 - core index']
  #allocation1 [shape = 'u32[144,128]{1,0:T(1,128)}', space=vmem, size = 0x12000, scoped, tag = 'internal scratch']
  #allocation2 [shape = 'f32[1]{0:T(128)S(6)}', space=smem, size = 0x200, scoped, tag = 'scoped memory for soft_thr_layer.1']
  #allocation3 [shape = 'f32[1]{0:T(128)S(6)}', space=smem, size = 0x200, scoped, tag = 'scoped memory for soft_thr_layer.1']
  %s0 = inlined_call_operand.<no memory space> [shape: f32[1], index: 0, kind: input, shape index: {}]
  %s1 = inlined_call_operand.<no memory space> [shape: f32[1], index: 1, kind: input, shape index: {}]
  %s2 = inlined_call_operand.vmem [shape: f32[32,128], index: 2, kind: input, shape index: {}]
  %s3 = inlined_call_operand.vmem [shape: f32[32,128], index: 3, kind: output, shape index: {}]
  %s4 = sld [smem:[#allocation0]]
  $region22: #{soft_thr_layer.1} parent=0
    _
  %s6 = ssub.s32 1, %s4
  %s7 = scalar_select 0, %s6, %s4
  %8 = sst [smem:[#allocation2]] %s0
  %9 = sst [smem:[#allocation3]] %s1
  // Predicated region
  $region2: #{soft_thr_layer.1} parent=0 // pred_check
    _
  $region3: #{soft_thr_layer.1} parent=0 // pred_check_branch
    %11 = sbr.rel (0) target = $region5
  $region4: #{soft_thr_layer.1} parent=0 // pred_region
    _
  $region5: #{soft_thr_layer.1} parent=0 // pred_fallthru
    _
  // Predicated region
  $region6: #{soft_thr_layer.1} parent=0 // pred_check
    _
  $region7: #{soft_thr_layer.1} parent=0 // pred_check_branch
    %13 = sbr.rel (0) target = $region9
  $region8: #{soft_thr_layer.1} parent=0 // pred_region
    _
  $region9: #{soft_thr_layer.1} parent=0 // pred_fallthru
    _
  // Predicated region
  $region10: #{soft_thr_layer.1} parent=0 // pred_check
    _
  $region11: #{soft_thr_layer.1} parent=0 // pred_check_branch
    %15 = sbr.rel (0) target = $region13
  $region12: #{soft_thr_layer.1} parent=0 // pred_region
    _
  $region13: #{soft_thr_layer.1} parent=0 // pred_fallthru
    _
  %s16 = sld [smem:[#allocation3]]
  %s17 = sld [smem:[#allocation2]]
  %s18 = smul.f32 %s16, %s17
  %v19 = vld [vmem:[%s2] sm:$0xff]
  %v20 = vld [vmem:[%s2 + $0x8] sm:$0xff]
  %v21 = vld [vmem:[%s2 + $0x10] sm:$0xff]
  %v22 = vld [vmem:[%s2 + $0x18] sm:$0xff]
  %v23 = vstv %s18
  %vm24 = vcmp.gt.f32.partialorder %v19, %v23
  %vm25 = vcmp.gt.f32.partialorder %v20, %v23
  %vm26 = vcmp.gt.f32.partialorder %v21, %v23
  %vm27 = vcmp.gt.f32.partialorder %v22, %v23
  %v28 = vsub.f32 %v19, %v23
  %v29 = vsub.f32 %v20, %v23
  %v30 = vsub.f32 %v21, %v23
  %v31 = vsub.f32 %v22, %v23
  %s32 = ssub.f32 0.0, %s18
  %v33 = vstv %s32
  %vm34 = vcmp.lt.f32.partialorder %v19, %v33
  %vm35 = vcmp.lt.f32.partialorder %v20, %v33
  %vm36 = vcmp.lt.f32.partialorder %v21, %v33
  %vm37 = vcmp.lt.f32.partialorder %v22, %v33
  %v38 = vadd.f32 %v19, %v23
  %v39 = vadd.f32 %v20, %v23
  %v40 = vadd.f32 %v21, %v23
  %v41 = vadd.f32 %v22, %v23
  %v42 = vsel %vm34, %v38, 0.0
  %v43 = vsel %vm35, %v39, 0.0
  %v44 = vsel %vm36, %v40, 0.0
  %v45 = vsel %vm37, %v41, 0.0
  %v46 = vsel %vm24, %v28, %v42
  %v47 = vsel %vm25, %v29, %v43
  %v48 = vsel %vm26, %v30, %v44
  %v49 = vsel %vm27, %v31, %v45
  %50 = vst [vmem:[%s3] sm:$0xff] %v46
  %51 = vst [vmem:[%s3 + $0x8] sm:$0xff] %v47
  %52 = vst [vmem:[%s3 + $0x10] sm:$0xff] %v48
  %53 = vst [vmem:[%s3 + $0x18] sm:$0xff] %v49
  // Predicated region
  $region14: #{soft_thr_layer.1} parent=0 // pred_check
    _
  $region15: #{soft_thr_layer.1} parent=0 // pred_check_branch
    %55 = sbr.rel (0) target = $region17
  $region16: #{soft_thr_layer.1} parent=0 // pred_region
    _
  $region17: #{soft_thr_layer.1} parent=0 // pred_fallthru
    _
  // Predicated region
  $region18: #{soft_thr_layer.1} parent=0 // pred_check
    _
  $region19: #{soft_thr_layer.1} parent=0 // pred_check_branch
    %57 = sbr.rel (0) target = $region21
  $region20: #{soft_thr_layer.1} parent=0 // pred_region
    _
  $region21: #{soft_thr_layer.1} parent=0 // pred_fallthru
    _

// kernel: custom-call.2
$region0: #{custom-call.2}
  %s0 = inlined_call_operand.vmem [shape: f32[2,4,16,16], index: 0, kind: input, shape index: {}]
  %s1 = inlined_call_operand.vmem [shape: f32[2,4,16,16], index: 1, kind: input, shape index: {}]
  %s2 = inlined_call_operand.hbm [shape: c64[2,4,16,16], index: 2, kind: output, shape index: {}]
  %s3 = scalar_lea.hbm %s2, 2048
  $region1: #{custom-call.2} parent=0
    #allocation0 [shape = 's32[1]{0}', space=sflag, size = 0x4, scoped, tag = 'scoped memory for custom-call.2']
    %4 = vsyncpa [#allocation0], 0
    %s5 = sshll.u32 %s0, 4
    %s6 = int_to_ptr.vmem [resolvable:$true] %s5
    %8 = dma.vmem_to_hbm [thread:$0]  %s6, 2048, %s2, [#allocation0]
    %9 = dma.done [#allocation0], 2048
    %10 = vsyncpa [#allocation0], 1
  $region2: #{custom-call.2} parent=0
    #allocation1 [shape = 's32[1]{0}', space=sflag, size = 0x4, scoped, tag = 'scoped memory for custom-call.2']
    %11 = vsyncpa [#allocation1], 0
    %s12 = sshll.u32 %s1, 4
    %s13 = int_to_ptr.vmem [resolvable:$true] %s12
    %15 = dma.vmem_to_hbm [thread:$0]  %s13, 2048, %s3, [#allocation1]
    %16 = dma.done [#allocation1], 2048
    %17 = vsyncpa [#allocation1], 1

</llo_original>
